<compile_context>
chip_gen: v5e
topology: v5e:2x2
jax: 0.10.0
libtpu: 0.0.40
codegen_flags: <defaults>
</compile_context>

<pallas_src>
import functools

import jax
import jax.numpy as jnp
from jax.experimental import pallas as pl
from jax.experimental.pallas import tpu as pltpu


def _round_up(x, m):
    return (x + m - 1) // m * m


def _crd_kernel(adj_ref, f_ref, w_ref, b_ref, r_ref, o_ref, acc_ref, *,
                p, training, project):
    """grid = (row blocks, k blocks); acc_ref: (TM, d_f) f32 scratch."""
    k = pl.program_id(1)

    @pl.when(k == 0)
    def _():
        acc_ref[...] = jnp.zeros_like(acc_ref)

    # Aggregate one (TM, TK) x (TK, d_f) slab on the MXU, accumulate in f32.
    acc_ref[...] += jnp.dot(adj_ref[...], f_ref[...],
                            preferred_element_type=jnp.float32)

    @pl.when(k == pl.num_programs(1) - 1)
    def _():
        acc = acc_ref[...]
        if project:
            # (A_hat @ X) @ W -- tiny (TM, d_in) x (d_in, d_pad) matmul.
            y = jnp.dot(acc, w_ref[...].astype(jnp.float32),
                        preferred_element_type=jnp.float32)
        else:
            # Features were already X @ W; acc is the aggregated output.
            y = acc
        y = jnp.maximum(y + b_ref[...], 0.0)                  # bias + ReLU
        if training and p > 0.0:
            # F.dropout semantics: drop with prob p, scale survivors 1/(1-p).
            keep = r_ref[...] >= jnp.float32(p)
            y = jnp.where(keep, y * jnp.float32(1.0 / (1.0 - p)), 0.0)
        o_ref[...] = y.astype(o_ref.dtype)


def crd_forward(x, adj_hat, weight, bias, dropout_key, *, p, training=False,
                tm=256, tk=512, compute_dtype=jnp.bfloat16):
    """CRD forward:  dropout(relu(A_hat @ X @ W + b), p, training).

    x: (N, d_in) f32, adj_hat: (N, N) normalized dense adjacency,
    weight: (d_in, d_out), bias: (d_out,) or (1, d_out),
    dropout_key: jax PRNG key (only consumed when training and p > 0).
    """
    n, d_in = x.shape
    d_out = weight.shape[1]
    out_dtype = x.dtype

    # Lane-dense output: pad the channel axis to a multiple of 128.
    d_pad = _round_up(max(d_out, 128), 128)

    # Matmul association: put the cheap feature dim on the O(N^2) matmul.
    project = d_in <= d_out
    if project:
        feats = x                                   # kernel aggregates A_hat @ X
        d_f = d_in
    else:
        # Hoist X @ W once (small XLA matmul); kernel aggregates A_hat @ (XW).
        feats = jnp.pad(jnp.dot(x, weight), ((0, 0), (0, d_pad - d_out)))
        d_f = d_pad

    w_pad = jnp.pad(weight.astype(jnp.float32), ((0, 0), (0, d_pad - d_out)))
    b_pad = jnp.pad(jnp.reshape(bias, (1, -1)).astype(jnp.float32),
                    ((0, 0), (0, d_pad - d_out)))

    # Tile sizes: sublane axis multiple of 8, contraction axis multiple of 128.
    tm = _round_up(min(tm, _round_up(n, 8)), 8)
    tk = _round_up(min(tk, _round_up(n, 128)), 128)
    n_rows = _round_up(n, tm)
    n_cols = _round_up(n, tk)
    grid = (n_rows // tm, n_cols // tk)

    adj_p = jnp.pad(adj_hat, ((0, n_rows - n), (0, n_cols - n))).astype(compute_dtype)
    f_p = jnp.pad(feats, ((0, n_cols - n), (0, 0))).astype(compute_dtype)

    if training and p > 0.0:
        rand = jax.random.uniform(dropout_key, (n_rows, d_pad), jnp.float32)
    else:
        rand = jnp.zeros((n_rows, d_pad), jnp.float32)

    # Explicit scoped-VMEM budget: double-buffered tiles + resident accumulator,
    # with headroom.  Capped at 64 MiB so the same budget fits v7x physical VMEM.
    csz = adj_p.dtype.itemsize
    working = (2 * (tm * tk * csz + tk * d_f * csz + tm * d_pad * 4 +
                    tm * d_pad * 4 + d_in * d_pad * 4 + d_pad * 4)
               + tm * d_f * 4)
    vmem_limit = int(min(64 * 1024 * 1024, max(2 * working, 16 * 1024 * 1024)))

    flops = 2 * n_rows * n_cols * d_f + (2 * n_rows * d_f * d_pad if project else 0)
    bytes_accessed = int(adj_p.size * csz + f_p.size * csz + rand.size * 4 +
                         w_pad.size * 4 + b_pad.size * 4 + n_rows * d_pad * 4)

    kernel = functools.partial(_crd_kernel, p=float(p),
                               training=bool(training), project=project)

    out = pl.pallas_call(
        kernel,
        out_shape=jax.ShapeDtypeStruct((n_rows, d_pad), out_dtype),
        grid_spec=pltpu.PrefetchScalarGridSpec(
            num_scalar_prefetch=0,
            grid=grid,
            in_specs=[
                pl.BlockSpec((tm, tk), lambda i, k: (i, k)),        # A_hat tile
                pl.BlockSpec((tk, d_f), lambda i, k: (k, 0)),       # feature tile
                pl.BlockSpec((d_in, d_pad), lambda i, k: (0, 0)),   # weight (resident)
                pl.BlockSpec((1, d_pad), lambda i, k: (0, 0)),      # bias
                pl.BlockSpec((tm, d_pad), lambda i, k: (i, 0)),     # dropout uniforms
            ],
            out_specs=pl.BlockSpec((tm, d_pad), lambda i, k: (i, 0)),
            scratch_shapes=[pltpu.VMEM((tm, d_f), jnp.float32)],
        ),
        compiler_params=pltpu.CompilerParams(
            dimension_semantics=("parallel", "arbitrary"),
            vmem_limit_bytes=vmem_limit),
        cost_estimate=pl.CostEstimate(flops=flops, transcendentals=0,
                                      bytes_accessed=bytes_accessed),
    )(adj_p, f_p, w_pad, b_pad, rand)

    return out[:n, :d_out]


def gcn_norm_dense(edge_index, num_nodes, dtype=jnp.float32):
    """Dense A_hat = D^-1/2 (A + I) D^-1/2, matching PyG GCNConv defaults
    (add_self_loops=True, normalize=True, edge_weight=1).  Plain-JAX glue."""
    src = edge_index[0]
    dst = edge_index[1]
    a = jnp.zeros((num_nodes, num_nodes), dtype).at[dst, src].add(1.0)
    a = a + jnp.eye(num_nodes, dtype=dtype)          # self loops
    deg = a.sum(axis=1)
    dinv = jnp.where(deg > 0, 1.0 / jnp.sqrt(deg), 0.0)
    return dinv[:, None] * a * dinv[None, :]


if __name__ == "__main__":
    N, D_IN, D_OUT, P = 512, 16, 64, 0.5

    key = jax.random.PRNGKey(0)
    kx, kw, kd = jax.random.split(key, 3)

    # Node features.
    x = jax.random.normal(kx, (N, D_IN), dtype=jnp.float32)

    # Small deterministic graph: bidirectional ring.
    idx = jnp.arange(N)
    edge_index = jnp.concatenate(
        [jnp.stack([idx, (idx + 1) % N]), jnp.stack([(idx + 1) % N, idx])],
        axis=1).astype(jnp.int32)

    # GCNConv parameters (glorot weight, zero bias) -- deterministic init.
    limit = (6.0 / (D_IN + D_OUT)) ** 0.5
    weight = jax.random.uniform(kw, (D_IN, D_OUT), jnp.float32, -limit, limit)
    bias = jnp.zeros((D_OUT,), jnp.float32)

    adj_hat = gcn_norm_dense(edge_index, N)

    # Eval-mode forward (dropout is identity).  tm/tk chosen so the demo
    # exercises a (4, 4) grid including the k-accumulation path.
    out = jax.block_until_ready(
        crd_forward(x, adj_hat, weight, bias, kd, p=P, training=False,
                    tm=128, tk=128))

    # Pure-JAX f32 reference; tolerance is loose because the kernel streams the
    # adjacency/features in bf16 (accumulation stays f32).
    ref = jnp.maximum(adj_hat @ (x @ weight) + bias[None, :], 0.0)
    assert out.shape == ref.shape
    max_err = float(jnp.max(jnp.abs(out - ref)))
    assert jnp.allclose(out, ref, atol=5e-2, rtol=5e-2), f"eval mismatch {max_err}"

    # Training-mode forward: surviving entries are exactly eval/(1-p), and at
    # least some previously-nonzero entries were dropped.
    out_train = jax.block_until_ready(
        crd_forward(x, adj_hat, weight, bias, kd, p=P, training=True,
                    tm=128, tk=128))
    kept = out_train != 0.0
    scaled = out / (1.0 - P)
    consistency_err = jnp.where(kept, jnp.abs(out_train - scaled), 0.0)
    assert float(jnp.max(consistency_err)) < 1e-4, "dropout scaling mismatch"
    assert int(jnp.sum((out != 0.0) & ~kept)) > 0, "nothing was dropped"

    print("KERNEL_OK")
</pallas_src>

<mosaic_0001>
module attributes {stable_mosaic.version = 11 : i64} {
  func.func @_crd_kernel(%arg0: i32, %arg1: i32, %arg2: memref<128x128xbf16, #tpu.memory_space<vmem>>, %arg3: memref<128x16xbf16, #tpu.memory_space<vmem>>, %arg4: memref<16x128xf32, #tpu.memory_space<vmem>>, %arg5: memref<1x128xf32, #tpu.memory_space<vmem>>, %arg6: memref<128x128xf32, #tpu.memory_space<vmem>>, %arg7: memref<128x128xf32, #tpu.memory_space<vmem>>, %arg8: memref<128x16xf32, #tpu.memory_space<vmem>>) attributes {dimension_semantics = [#tpu.dimension_semantics<parallel>, #tpu.dimension_semantics<arbitrary>], iteration_bounds = array<i64: 4, 4>, scalar_prefetch = 0 : i64, scratch_operands = 1 : i64, tpu.core_type = #tpu.core_type<tc>, window_params = [{transform_indices = @transform_0, window_bounds = array<i64: 128, 128>}, {transform_indices = @transform_1, window_bounds = array<i64: 128, 16>}, {pipeline_mode = #tpu.pipeline_mode<synchronous>, transform_indices = @transform_2, window_bounds = array<i64: 16, 128>}, {pipeline_mode = #tpu.pipeline_mode<synchronous>, transform_indices = @transform_3, window_bounds = array<i64: 1, 128>}, {transform_indices = @transform_4, window_bounds = array<i64: 128, 128>}, {transform_indices = @transform_5, window_bounds = array<i64: 128, 128>}]} {
    %c0_i32 = arith.constant 0 : i32
    %0 = arith.cmpi eq, %arg1, %c0_i32 : i32
    %1 = arith.extui %0 : i1 to i32
    %c0_i32_0 = arith.constant 0 : i32
    %2 = arith.cmpi ne, %1, %c0_i32_0 : i32
    scf.if %2 {
      %cst_9 = arith.constant 0.000000e+00 : f32
      %12 = vector.broadcast %cst_9 : f32 to vector<128x16xf32>
      %c0_10 = arith.constant 0 : index
      %c0_11 = arith.constant 0 : index
      %13 = vector.load %arg8[%c0_10, %c0_11] : memref<128x16xf32, #tpu.memory_space<vmem>>, vector<128x16xf32>
      tpu.vector_store %arg8[%c0_10, %c0_11], %12 {strides = array<i32>} : memref<128x16xf32, #tpu.memory_space<vmem>>, vector<128x16xf32>,
    } else {
    }
    %c0 = arith.constant 0 : index
    %c0_1 = arith.constant 0 : index
    %3 = vector.load %arg8[%c0, %c0_1] : memref<128x16xf32, #tpu.memory_space<vmem>>, vector<128x16xf32>
    %c0_2 = arith.constant 0 : index
    %c0_3 = arith.constant 0 : index
    %4 = vector.load %arg2[%c0_2, %c0_3] : memref<128x128xbf16, #tpu.memory_space<vmem>>, vector<128x128xbf16>
    %c0_4 = arith.constant 0 : index
    %c0_5 = arith.constant 0 : index
    %5 = vector.load %arg3[%c0_4, %c0_5] : memref<128x16xbf16, #tpu.memory_space<vmem>>, vector<128x16xbf16>
    %cst = arith.constant dense<0.000000e+00> : vector<128x16xf32>
    %6 = tpu.matmul %4, %5, %cst {dimension_numbers = #tpu.dot_dimension_numbers<[1], [0], [0], [1], [0, 0, 1, 1], [], []>} : vector<128x128xbf16>, vector<128x16xbf16>, vector<128x16xf32> -> vector<128x16xf32>
    %7 = arith.addf %3, %6 : vector<128x16xf32>
    %c0_6 = arith.constant 0 : index
    %c0_7 = arith.constant 0 : index
    %8 = vector.load %arg8[%c0_6, %c0_7] : memref<128x16xf32, #tpu.memory_space<vmem>>, vector<128x16xf32>
    tpu.vector_store %arg8[%c0_6, %c0_7], %7 {strides = array<i32>} : memref<128x16xf32, #tpu.memory_space<vmem>>, vector<128x16xf32>,
    %c3_i32 = arith.constant 3 : i32
    %9 = arith.cmpi eq, %arg1, %c3_i32 : i32
    %10 = arith.extui %9 : i1 to i32
    %c0_i32_8 = arith.constant 0 : i32
    %11 = arith.cmpi ne, %10, %c0_i32_8 : i32
    scf.if %11 {
      %c0_9 = arith.constant 0 : index
      %c0_10 = arith.constant 0 : index
      %12 = vector.load %arg8[%c0_9, %c0_10] : memref<128x16xf32, #tpu.memory_space<vmem>>, vector<128x16xf32>
      %c0_11 = arith.constant 0 : index
      %c0_12 = arith.constant 0 : index
      %13 = vector.load %arg4[%c0_11, %c0_12] : memref<16x128xf32, #tpu.memory_space<vmem>>, vector<16x128xf32>
      %cst_13 = arith.constant dense<0.000000e+00> : vector<128x128xf32>
      %14 = tpu.matmul %12, %13, %cst_13 {dimension_numbers = #tpu.dot_dimension_numbers<[1], [0], [0], [1], [0, 0, 1, 1], [], []>} : vector<128x16xf32>, vector<16x128xf32>, vector<128x128xf32> -> vector<128x128xf32>
      %c0_14 = arith.constant 0 : index
      %c0_15 = arith.constant 0 : index
      %15 = vector.load %arg5[%c0_14, %c0_15] : memref<1x128xf32, #tpu.memory_space<vmem>>, vector<1x128xf32>
      %16 = vector.broadcast %15 : vector<1x128xf32> to vector<128x128xf32>
      %17 = arith.addf %14, %16 : vector<128x128xf32>
      %cst_16 = arith.constant 0.000000e+00 : f32
      %18 = vector.broadcast %cst_16 : f32 to vector<128x128xf32>
      %19 = arith.maximumf %17, %18 : vector<128x128xf32>
      %c0_17 = arith.constant 0 : index
      %c0_18 = arith.constant 0 : index
      %20 = vector.load %arg7[%c0_17, %c0_18] : memref<128x128xf32, #tpu.memory_space<vmem>>, vector<128x128xf32>
      tpu.vector_store %arg7[%c0_17, %c0_18], %19 {strides = array<i32>} : memref<128x128xf32, #tpu.memory_space<vmem>>, vector<128x128xf32>,
    } else {
    }
    return
  }
  func.func @transform_0(%arg0: i32, %arg1: i32) -> (i32, i32) {
    %c0_i32 = arith.constant 0 : i32
    return %arg0, %arg1 : i32, i32
  }
  func.func @transform_1(%arg0: i32, %arg1: i32) -> (i32, i32) {
    %c0_i32 = arith.constant 0 : i32
    %c0_i32_0 = arith.constant 0 : i32
    return %arg1, %c0_i32 : i32, i32
  }
  func.func @transform_2(%arg0: i32, %arg1: i32) -> (i32, i32) {
    %c0_i32 = arith.constant 0 : i32
    %c0_i32_0 = arith.constant 0 : i32
    %c0_i32_1 = arith.constant 0 : i32
    return %c0_i32, %c0_i32_0 : i32, i32
  }
  func.func @transform_3(%arg0: i32, %arg1: i32) -> (i32, i32) {
    %c0_i32 = arith.constant 0 : i32
    %c0_i32_0 = arith.constant 0 : i32
    %c0_i32_1 = arith.constant 0 : i32
    return %c0_i32, %c0_i32_0 : i32, i32
  }
  func.func @transform_4(%arg0: i32, %arg1: i32) -> (i32, i32) {
    %c0_i32 = arith.constant 0 : i32
    %c0_i32_0 = arith.constant 0 : i32
    return %arg0, %c0_i32 : i32, i32
  }
  func.func @transform_5(%arg0: i32, %arg1: i32) -> (i32, i32) {
    %c0_i32 = arith.constant 0 : i32
    %c0_i32_0 = arith.constant 0 : i32
    return %arg0, %c0_i32 : i32, i32
  }
}

</mosaic_0001>

<llo_original>
// kernel: tpu_custom_call.1
$region0: #{tpu_custom_call.1}
  #allocation0 [shape = 'u32[]', space=smem, size = 0x4, offset = 0x4, fixed_abs, tag = 'smem constant byte address 0x4 - core index']
  #allocation1 [shape = 'u32[72,128]{1,0:T(1,128)}', space=vmem, size = 0x9000, scoped, tag = 'internal scratch']
  #allocation2 [shape = 'f32[128,16]{1,0:T(8,128)}', space=vmem, size = 0x10000, scoped, tag = 'scratch operand']
  %s0 = inlined_call_operand.hbm [shape: bf16[512,512], index: 0, kind: input, shape index: {}]
  %s1 = inlined_call_operand.vmem [shape: bf16[512,16], index: 1, kind: input, shape index: {}]
  %s2 = inlined_call_operand.vmem [shape: f32[16,128], index: 2, kind: input, shape index: {}]
  %s3 = inlined_call_operand.vmem [shape: f32[1,128], index: 3, kind: input, shape index: {}]
  %s4 = inlined_call_operand.hbm [shape: f32[512,128], index: 4, kind: input, shape index: {}]
  %s5 = inlined_call_operand.hbm [shape: f32[512,128], index: 5, kind: output, shape index: {}]
  %s6 = sld [smem:[#allocation0]]
  $region69: #{tpu_custom_call.1} parent=0
    _
  %s8 = ssub.s32 1, %s6
  %s9 = scalar_select 0, %s8, %s6
  $region1: #{tpu_custom_call.1} parent=0
    #allocation3 [shape = 'u8[65536]{0}', space=vmem, size = 0x10000, scoped, tag = 'input window, operand 0']
    #allocation4 [shape = 's32[2]{0}', space=sflag, size = 0x8, scoped, tag = 'scoped memory for tpu_custom_call.1']
    #allocation5 [shape = 's32[2]{0}', space=sflag, size = 0x8, scoped, tag = 'scoped memory for tpu_custom_call.1']
    #allocation6 [shape = 'u8[131072]{0}', space=vmem, size = 0x20000, scoped, tag = 'input window, operand 4']
    #allocation7 [shape = 's32[2]{0}', space=sflag, size = 0x8, scoped, tag = 'scoped memory for tpu_custom_call.1']
    #allocation8 [shape = 'u8[131072]{0}', space=vmem, size = 0x20000, scoped, tag = 'output window, operand 0']
    %10 = vsyncpa [#allocation4], 0
    %s11 = scalar_lea.sflag [#allocation4], 1
    %12 = vsyncpa %s11, 0
    %13 = vsyncpa [#allocation7], 0
    %s14 = scalar_lea.sflag [#allocation7], 1
    %15 = vsyncpa %s14, 0
    %16 = vsyncpa [#allocation5], 0
    %s17 = scalar_lea.sflag [#allocation5], 1
    %18 = vsyncpa %s17, 0
    loop: start=0, step=1, limit=18
    $region2: #{tpu_custom_call.1} parent=1 // loop_pre_header
      _
    $region3: #{tpu_custom_call.1} parent=1 // loop_header
      %s20 = sphi 0, %s24
      %p21 = scmp.ge.s32.totalorder %s20, 18
      %s27 = sphi 0, %s39
      %s28 = sphi 0, %s35
      %s29 = sphi 0, %s27
      %s30 = sphi 0, %s28
      %s31 = sphi 0, %s29
      %s32 = sphi 0, %s30
      %s44 = sphi 0, %s46
      %s47 = sphi 0, %s44
      %s48 = sphi 0, %s47
      %s64 = sphi 0, %s48
      %s70 = sphi 0, %s72
      %s73 = sphi 0, %s70
      %s74 = sphi 0, %s73
      %s90 = sphi 0, %s74
      %s94 = sphi 0, %s94
      %s96 = sphi 0, %s94
      %s97 = sphi 0, %s96
      %s111 = sphi 0, %s97
      %s115 = sphi 0, %s115
      %s117 = sphi 0, %s115
      %s118 = sphi 0, %s117
      %s132 = sphi 0, %s118
      %s138 = sphi 0, %s140
      %s141 = sphi 0, %s138
      %s142 = sphi 0, %s141
      %s158 = sphi 0, %s142
      %s164 = sphi 0, %s166
      %s167 = sphi 0, %s164
      %s168 = sphi 0, %s167
      %s184 = sphi 0, %s168
    $region4: #{tpu_custom_call.1} parent=1 // loop_header_branch
      %23 = sbr.rel (%p21) target = $region8
    $region5: #{tpu_custom_call.1} parent=1 // loop_body
      %s25 = ssub.s32 %s20, 1
      %s26 = ssub.s32 %s20, 2
      %s33 = sadd.s32 1, %s28
      %p34 = scmp.ge.s32.totalorder %s33, 4
      %s35 = scalar_select %p34, 0, %s33
      %s36 = sadd.s32 1, %s27
      %s37 = scalar_select %p34, %s36, %s27
      %p38 = scmp.ge.s32.totalorder %s37, 4
      %s39 = scalar_select %p38, 0, %s37
      %s40 = ssub.s32 %s27, %s39
      %s41 = ssub.s32 %s28, %s35
      %s42 = sor.u32 %s40, %s41
      %p43 = scmp.eq.s32.totalorder %s42, 0
      %s45 = sadd.s32 %s44, 1
      %s46 = scalar_select %p43, %s44, %s45
      %p49 = pneg %p43
      %p50 = scmp.eq.s32.totalorder %s20, 15
      %p51 = por %p49, %p50
      %p52 = scmp.ne.s32.totalorder %s44, %s47
      %p53 = scmp.eq.s32.totalorder %s20, 0
      %p54 = por %p52, %p53
      %p55 = scmp.ne.s32.totalorder %s44, %s47
      %p56 = scmp.eq.s32.totalorder %s25, 15
      %p57 = por %p55, %p56
      %p58 = scmp.ne.s32.totalorder %s47, %s48
      %p59 = scmp.eq.s32.totalorder %s25, 0
      %p60 = por %p58, %p59
      %p61 = scmp.ne.s32.totalorder %s47, %s48
      %p62 = scmp.eq.s32.totalorder %s26, 15
      %p63 = por %p61, %p62
      %p65 = scmp.ne.s32.totalorder %s48, %s64
      %p66 = scmp.eq.s32.totalorder %s26, 0
      %p67 = por %p65, %p66
      %s68 = ssub.s32 %s28, %s35
      %p69 = scmp.eq.s32.totalorder %s68, 0
      %s71 = sadd.s32 %s70, 1
      %s72 = scalar_select %p69, %s70, %s71
      %p75 = pneg %p69
      %p76 = scmp.eq.s32.totalorder %s20, 15
      %p77 = por %p75, %p76
      %p78 = scmp.ne.s32.totalorder %s70, %s73
      %p79 = scmp.eq.s32.totalorder %s20, 0
      %p80 = por %p78, %p79
      %p81 = scmp.ne.s32.totalorder %s70, %s73
      %p82 = scmp.eq.s32.totalorder %s25, 15
      %p83 = por %p81, %p82
      %p84 = scmp.ne.s32.totalorder %s73, %s74
      %p85 = scmp.eq.s32.totalorder %s25, 0
      %p86 = por %p84, %p85
      %p87 = scmp.ne.s32.totalorder %s73, %s74
      %p88 = scmp.eq.s32.totalorder %s26, 15
      %p89 = por %p87, %p88
      %p91 = scmp.ne.s32.totalorder %s74, %s90
      %p92 = scmp.eq.s32.totalorder %s26, 0
      %p93 = por %p91, %p92
      %s95 = sadd.s32 %s94, 1
      %p98 = scmp.eq.s32.totalorder %s20, 15
      %p99 = scmp.ne.s32.totalorder %s94, %s96
      %p100 = scmp.eq.s32.totalorder %s20, 0
      %p101 = por %p99, %p100
      %p102 = scmp.ne.s32.totalorder %s94, %s96
      %p103 = scmp.eq.s32.totalorder %s25, 15
      %p104 = por %p102, %p103
      %p105 = scmp.ne.s32.totalorder %s96, %s97
      %p106 = scmp.eq.s32.totalorder %s25, 0
      %p107 = por %p105, %p106
      %p108 = scmp.ne.s32.totalorder %s96, %s97
      %p109 = scmp.eq.s32.totalorder %s26, 15
      %p110 = por %p108, %p109
      %p112 = scmp.ne.s32.totalorder %s97, %s111
      %p113 = scmp.eq.s32.totalorder %s26, 0
      %p114 = por %p112, %p113
      %s116 = sadd.s32 %s115, 1
      %p119 = scmp.eq.s32.totalorder %s20, 15
      %p120 = scmp.ne.s32.totalorder %s115, %s117
      %p121 = scmp.eq.s32.totalorder %s20, 0
      %p122 = por %p120, %p121
      %p123 = scmp.ne.s32.totalorder %s115, %s117
      %p124 = scmp.eq.s32.totalorder %s25, 15
      %p125 = por %p123, %p124
      %p126 = scmp.ne.s32.totalorder %s117, %s118
      %p127 = scmp.eq.s32.totalorder %s25, 0
      %p128 = por %p126, %p127
      %p129 = scmp.ne.s32.totalorder %s117, %s118
      %p130 = scmp.eq.s32.totalorder %s26, 15
      %p131 = por %p129, %p130
      %p133 = scmp.ne.s32.totalorder %s118, %s132
      %p134 = scmp.eq.s32.totalorder %s26, 0
      %p135 = por %p133, %p134
      %s136 = ssub.s32 %s27, %s39
      %p137 = scmp.eq.s32.totalorder %s136, 0
      %s139 = sadd.s32 %s138, 1
      %s140 = scalar_select %p137, %s138, %s139
      %p143 = pneg %p137
      %p144 = scmp.eq.s32.totalorder %s20, 15
      %p145 = por %p143, %p144
      %p146 = scmp.ne.s32.totalorder %s138, %s141
      %p147 = scmp.eq.s32.totalorder %s20, 0
      %p148 = por %p146, %p147
      %p149 = scmp.ne.s32.totalorder %s138, %s141
      %p150 = scmp.eq.s32.totalorder %s25, 15
      %p151 = por %p149, %p150
      %p152 = scmp.ne.s32.totalorder %s141, %s142
      %p153 = scmp.eq.s32.totalorder %s25, 0
      %p154 = por %p152, %p153
      %p155 = scmp.ne.s32.totalorder %s141, %s142
      %p156 = scmp.eq.s32.totalorder %s26, 15
      %p157 = por %p155, %p156
      %p159 = scmp.ne.s32.totalorder %s142, %s158
      %p160 = scmp.eq.s32.totalorder %s26, 0
      %p161 = por %p159, %p160
      %s162 = ssub.s32 %s27, %s39
      %p163 = scmp.eq.s32.totalorder %s162, 0
      %s165 = sadd.s32 %s164, 1
      %s166 = scalar_select %p163, %s164, %s165
      %p169 = pneg %p163
      %p170 = scmp.eq.s32.totalorder %s20, 15
      %p171 = por %p169, %p170
      %p172 = scmp.ne.s32.totalorder %s164, %s167
      %p173 = scmp.eq.s32.totalorder %s20, 0
      %p174 = por %p172, %p173
      %p175 = scmp.ne.s32.totalorder %s164, %s167
      %p176 = scmp.eq.s32.totalorder %s25, 15
      %p177 = por %p175, %p176
      %p178 = scmp.ne.s32.totalorder %s167, %s168
      %p179 = scmp.eq.s32.totalorder %s25, 0
      %p180 = por %p178, %p179
      %p181 = scmp.ne.s32.totalorder %s167, %s168
      %p182 = scmp.eq.s32.totalorder %s26, 15
      %p183 = por %p181, %p182
      %p185 = scmp.ne.s32.totalorder %s168, %s184
      %p186 = scmp.eq.s32.totalorder %s26, 0
      %p187 = por %p185, %p186
      %p188 = scmp.le.s32.totalorder 1, %s20
      %p189 = scmp.lt.s32.totalorder %s20, 17
      %p190 = pnand %p188, %p189
      %p191 = pneg %p190
      // Predicated region
      $region9: #{tpu_custom_call.1} parent=5 // pred_check
        _
      $region10: #{tpu_custom_call.1} parent=5 // pred_check_branch
        %193 = sbr.rel (%p190) target = $region12
      $region11: #{tpu_custom_call.1} parent=5 // pred_region
        %s194 = ssub.s32 %s20, 1
        // Predicated region
        $region13: #{tpu_custom_call.1} parent=11 // pred_check
          %p195 = pneg %p107
        $region14: #{tpu_custom_call.1} parent=11 // pred_check_branch
          %197 = sbr.rel (%p195) target = $region16
        $region15: #{tpu_custom_call.1} parent=11 // pred_region
          _
        $region16: #{tpu_custom_call.1} parent=11 // pred_fallthru
          _
        // Predicated region
        $region17: #{tpu_custom_call.1} parent=11 // pred_check
          %p198 = pneg %p128
        $region18: #{tpu_custom_call.1} parent=11 // pred_check_branch
          %200 = sbr.rel (%p198) target = $region20
        $region19: #{tpu_custom_call.1} parent=11 // pred_region
          _
        $region20: #{tpu_custom_call.1} parent=11 // pred_fallthru
          _
      $region12: #{tpu_custom_call.1} parent=5 // pred_fallthru
        _
      %p201 = scmp.lt.s32.totalorder %s20, 16
      // Predicated region
      $region21: #{tpu_custom_call.1} parent=5 // pred_check
        %p202 = pneg %p201
      $region22: #{tpu_custom_call.1} parent=5 // pred_check_branch
        %204 = sbr.rel (%p202) target = $region24
      $region23: #{tpu_custom_call.1} parent=5 // pred_region
        // Predicated region
        $region25: #{tpu_custom_call.1} parent=23 // pred_check
          %p205 = pneg %p54
        $region26: #{tpu_custom_call.1} parent=23 // pred_check_branch
          %207 = sbr.rel (%p205) target = $region28
        $region27: #{tpu_custom_call.1} parent=23 // pred_region
          %s208 = sand.u32 %s44, 1
          %s209 = scalar_lea.sflag [#allocation4], %s208
          %s210 = sand.u32 %s44, 1
          %s211 = smul.addr %s210, 64
          %s212 = scalar_lea.vmem [#allocation3], %s211
          %s213 = smul.u32 16, %s27
          %215 = vsyncadd %s209, 0
          %s216 = smul.addr %s213, 4
          %s217 = sadd.s32 %s28, %s216
          %s218 = smul.addr %s217, 4
          %s219 = scalar_lea.hbm %s0, %s218
          %s220 = sshll.u32 %s219, 4
          %s221 = int_to_ptr.hbm [resolvable:$true] %s220
          %s222 = sshll.u32 %s212, 4
          %s223 = int_to_ptr.vmem [resolvable:$true] %s222
          %228 = dma.hbm_to_vmem [thread:$0]  %s221, 1024, %s223, %s209, 256, 64, 4
        $region28: #{tpu_custom_call.1} parent=23 // pred_fallthru
          _
        // Predicated region
        $region29: #{tpu_custom_call.1} parent=23 // pred_check
          %p229 = pneg %p80
        $region30: #{tpu_custom_call.1} parent=23 // pred_check_branch
          %231 = sbr.rel (%p229) target = $region32
        $region31: #{tpu_custom_call.1} parent=23 // pred_region
          %s232 = smul.u32 16, %s28
          %p233 = scmp.lt.s32.totalorder %s232, 63
          %s234 = scalar_select %p233, %s232, 63
          %s235 = smul.addr %s234, 4
          %s236 = scalar_lea.vmem %s1, %s235
          %s237 = smul.u32 16, %s28
        $region32: #{tpu_custom_call.1} parent=23 // pred_fallthru
          _
        // Predicated region
        $region33: #{tpu_custom_call.1} parent=23 // pred_check
          %p238 = pneg %p148
        $region34: #{tpu_custom_call.1} parent=23 // pred_check_branch
          %240 = sbr.rel (%p238) target = $region36
        $region35: #{tpu_custom_call.1} parent=23 // pred_region
          %s241 = sand.u32 %s138, 1
          %s242 = scalar_lea.sflag [#allocation7], %s241
          %s243 = sand.u32 %s138, 1
          %s244 = smul.addr %s243, 128
          %s245 = scalar_lea.vmem [#allocation6], %s244
          %s246 = smul.u32 16, %s27
          %248 = vsyncadd %s242, 0
          %s249 = smul.addr %s246, 8
          %s250 = scalar_lea.hbm %s4, %s249
          %s251 = sshll.u32 %s250, 4
          %s252 = int_to_ptr.hbm [resolvable:$true] %s251
          %s253 = sshll.u32 %s245, 4
          %s254 = int_to_ptr.vmem [resolvable:$true] %s253
          %259 = dma.hbm_to_vmem [thread:$0]  %s252, 2048, %s254, %s242, 128, 128, 8
        $region36: #{tpu_custom_call.1} parent=23 // pred_fallthru
          _
      $region24: #{tpu_custom_call.1} parent=5 // pred_fallthru
        _
      %p260 = scmp.le.s32.totalorder 1, %s20
      %p261 = scmp.lt.s32.totalorder %s20, 17
      %p262 = pnand %p260, %p261
      %p263 = pneg %p262
      // Predicated region
      $region37: #{tpu_custom_call.1} parent=5 // pred_check
        _
      $region38: #{tpu_custom_call.1} parent=5 // pred_check_branch
        %265 = sbr.rel (%p262) target = $region40
      $region39: #{tpu_custom_call.1} parent=5 // pred_region
        %s266 = ssub.s32 %s20, 1
        %s267 = sand.u32 %s47, 1
        %s268 = scalar_lea.sflag [#allocation4], %s267
        %s269 = sand.u32 %s47, 1
        %s270 = smul.addr %s269, 64
        %s271 = scalar_lea.vmem [#allocation3], %s270
        // Predicated region
        $region41: #{tpu_custom_call.1} parent=39 // pred_check
          %p272 = pneg %p60
        $region42: #{tpu_custom_call.1} parent=39 // pred_check_branch
          %274 = sbr.rel (%p272) target = $region44
        $region43: #{tpu_custom_call.1} parent=39 // pred_region
          %276 = dma.done %s268, 1024
        $region44: #{tpu_custom_call.1} parent=39 // pred_fallthru
          _
        %s277 = sand.u32 %s141, 1
        %s278 = scalar_lea.sflag [#allocation7], %s277
        %s279 = sand.u32 %s141, 1
        %s280 = smul.addr %s279, 128
        %s281 = scalar_lea.vmem [#allocation6], %s280
        // Predicated region
        $region45: #{tpu_custom_call.1} parent=39 // pred_check
          %p282 = pneg %p154
        $region46: #{tpu_custom_call.1} parent=39 // pred_check_branch
          %284 = sbr.rel (%p282) target = $region48
        $region47: #{tpu_custom_call.1} parent=39 // pred_region
          %286 = dma.done %s278, 2048
        $region48: #{tpu_custom_call.1} parent=39 // pred_fallthru
          _
        %s287 = sand.u32 %s47, 1
        %s288 = scalar_lea.sflag [#allocation4], %s287
        %s289 = sand.u32 %s47, 1
        %s290 = smul.addr %s289, 64
        %s291 = scalar_lea.vmem [#allocation3], %s290
        %p292 = pneg %p60
        %p293 = pneg %p57
        %s294 = smul.u32 16, %s30
        %p295 = scmp.lt.s32.totalorder %s294, 63
        %s296 = scalar_select %p295, %s294, 63
        %s297 = smul.addr %s296, 4
        %s298 = scalar_lea.vmem %s1, %s297
        %p299 = pneg %p86
        %p300 = pneg %p83
        %p301 = pneg %p107
        %p302 = pneg %p104
        %p303 = pneg %p128
        %p304 = pneg %p125
        %s305 = sand.u32 %s141, 1
        %s306 = scalar_lea.sflag [#allocation7], %s305
        %s307 = sand.u32 %s141, 1
        %s308 = smul.addr %s307, 128
        %s309 = scalar_lea.vmem [#allocation6], %s308
        %p310 = pneg %p154
        %p311 = pneg %p151
        %p312 = pneg %p180
        %p313 = pneg %p177
        %s314 = sand.u32 %s167, 1
        %s315 = scalar_lea.sflag [#allocation5], %s314
        %s316 = sand.u32 %s167, 1
        %s317 = smul.addr %s316, 128
        %s318 = scalar_lea.vmem [#allocation8], %s317
        %s319 = smul.u32 16, %s29
        %s320 = smul.u32 16, %s30
        %p321 = scmp.lt.s32.totalorder %s320, 63
        %s322 = scalar_select %p321, %s320, 63
        %s323 = smul.addr %s322, 4
        %s324 = scalar_lea.vmem %s1, %s323
        %s325 = smul.u32 16, %s30
        %s326 = smul.u32 16, %s29
        %s327 = smul.u32 16, %s29
        %p328 = scmp.eq.s32.totalorder %s30, 0
        // Predicated region
        $region49: #{tpu_custom_call.1} parent=39 // pred_check
          %p329 = pneg %p328
        $region50: #{tpu_custom_call.1} parent=39 // pred_check_branch
          %331 = sbr.rel (%p329) target = $region52
        $region51: #{tpu_custom_call.1} parent=39 // pred_region
          %vm332 = vcmask 130048
          %333 = vst.msk [vmem:[#allocation2] sm:$0xff] %vm332, 0.0
          %334 = vst.msk [vmem:[#allocation2 + $0x8] sm:$0xff] %vm332, 0.0
          %335 = vst.msk [vmem:[#allocation2 + $0x10] sm:$0xff] %vm332, 0.0
          %336 = vst.msk [vmem:[#allocation2 + $0x18] sm:$0xff] %vm332, 0.0
          %337 = vst.msk [vmem:[#allocation2 + $0x20] sm:$0xff] %vm332, 0.0
          %338 = vst.msk [vmem:[#allocation2 + $0x28] sm:$0xff] %vm332, 0.0
          %339 = vst.msk [vmem:[#allocation2 + $0x30] sm:$0xff] %vm332, 0.0
          %340 = vst.msk [vmem:[#allocation2 + $0x38] sm:$0xff] %vm332, 0.0
          %341 = vst.msk [vmem:[#allocation2 + $0x40] sm:$0xff] %vm332, 0.0
          %342 = vst.msk [vmem:[#allocation2 + $0x48] sm:$0xff] %vm332, 0.0
          %343 = vst.msk [vmem:[#allocation2 + $0x50] sm:$0xff] %vm332, 0.0
          %344 = vst.msk [vmem:[#allocation2 + $0x58] sm:$0xff] %vm332, 0.0
          %345 = vst.msk [vmem:[#allocation2 + $0x60] sm:$0xff] %vm332, 0.0
          %346 = vst.msk [vmem:[#allocation2 + $0x68] sm:$0xff] %vm332, 0.0
          %347 = vst.msk [vmem:[#allocation2 + $0x70] sm:$0xff] %vm332, 0.0
          %348 = vst.msk [vmem:[#allocation2 + $0x78] sm:$0xff] %vm332, 0.0
        $region52: #{tpu_custom_call.1} parent=39 // pred_fallthru
          _
        %v349 = vld [vmem:[#allocation2] sm:$0xff]
        %v350 = vld [vmem:[#allocation2 + $0x8] sm:$0xff]
        %v351 = vld [vmem:[#allocation2 + $0x10] sm:$0xff]
        %v352 = vld [vmem:[#allocation2 + $0x18] sm:$0xff]
        %v353 = vld [vmem:[#allocation2 + $0x20] sm:$0xff]
        %v354 = vld [vmem:[#allocation2 + $0x28] sm:$0xff]
        %v355 = vld [vmem:[#allocation2 + $0x30] sm:$0xff]
        %v356 = vld [vmem:[#allocation2 + $0x38] sm:$0xff]
        %v357 = vld [vmem:[#allocation2 + $0x40] sm:$0xff]
        %v358 = vld [vmem:[#allocation2 + $0x48] sm:$0xff]
        %v359 = vld [vmem:[#allocation2 + $0x50] sm:$0xff]
        %v360 = vld [vmem:[#allocation2 + $0x58] sm:$0xff]
        %v361 = vld [vmem:[#allocation2 + $0x60] sm:$0xff]
        %v362 = vld [vmem:[#allocation2 + $0x68] sm:$0xff]
        %v363 = vld [vmem:[#allocation2 + $0x70] sm:$0xff]
        %v364 = vld [vmem:[#allocation2 + $0x78] sm:$0xff]
        %v365 = vld [vmem:[%s271] sm:$0xf]
        %v366 = vld [vmem:[%s271 + $0x4] sm:$0xf]
        %v367 = vld [vmem:[%s271 + $0x8] sm:$0xf]
        %v368 = vld [vmem:[%s271 + $0xc] sm:$0xf]
        %v369 = vld [vmem:[%s271 + $0x10] sm:$0xf]
        %v370 = vld [vmem:[%s271 + $0x14] sm:$0xf]
        %v371 = vld [vmem:[%s271 + $0x18] sm:$0xf]
        %v372 = vld [vmem:[%s271 + $0x1c] sm:$0xf]
        %v373 = vld [vmem:[%s271 + $0x20] sm:$0xf]
        %v374 = vld [vmem:[%s271 + $0x24] sm:$0xf]
        %v375 = vld [vmem:[%s271 + $0x28] sm:$0xf]
        %v376 = vld [vmem:[%s271 + $0x2c] sm:$0xf]
        %v377 = vld [vmem:[%s271 + $0x30] sm:$0xf]
        %v378 = vld [vmem:[%s271 + $0x34] sm:$0xf]
        %v379 = vld [vmem:[%s271 + $0x38] sm:$0xf]
        %v380 = vld [vmem:[%s271 + $0x3c] sm:$0xf]
        %v381 = vld [vmem:[%s324] sm:$0xf]
        %v382 = vld [vmem:[%s324 + $0x4] sm:$0xf]
        %v383 = vld [vmem:[%s324 + $0x8] sm:$0xf]
        %v384 = vld [vmem:[%s324 + $0xc] sm:$0xf]
        %v385 = vld [vmem:[%s324 + $0x10] sm:$0xf]
        %v386 = vld [vmem:[%s324 + $0x14] sm:$0xf]
        %v387 = vld [vmem:[%s324 + $0x18] sm:$0xf]
        %v388 = vld [vmem:[%s324 + $0x1c] sm:$0xf]
        %v389 = vld [vmem:[%s324 + $0x20] sm:$0xf]
        %v390 = vld [vmem:[%s324 + $0x24] sm:$0xf]
        %v391 = vld [vmem:[%s324 + $0x28] sm:$0xf]
        %v392 = vld [vmem:[%s324 + $0x2c] sm:$0xf]
        %v393 = vld [vmem:[%s324 + $0x30] sm:$0xf]
        %v394 = vld [vmem:[%s324 + $0x34] sm:$0xf]
        %v395 = vld [vmem:[%s324 + $0x38] sm:$0xf]
        %v396 = vld [vmem:[%s324 + $0x3c] sm:$0xf]
        %v413 = vunpack.c.l.b16 %v365
        %v414 = vunpack.c.l.b16 %v366
        %v415 = vunpack.c.l.b16 %v367
        %v416 = vunpack.c.l.b16 %v368
        %v417 = vunpack.c.l.b16 %v369
        %v418 = vunpack.c.l.b16 %v370
        %v419 = vunpack.c.l.b16 %v371
        %v420 = vunpack.c.l.b16 %v372
        %v421 = vunpack.c.l.b16 %v373
        %v422 = vunpack.c.l.b16 %v374
        %v423 = vunpack.c.l.b16 %v375
        %v424 = vunpack.c.l.b16 %v376
        %v425 = vunpack.c.l.b16 %v377
        %v426 = vunpack.c.l.b16 %v378
        %v427 = vunpack.c.l.b16 %v379
        %v428 = vunpack.c.l.b16 %v380
        %v429 = vpack.c.b16 %v414, %v413
        %v430 = vpack.c.b16 %v416, %v415
        %v431 = vpack.c.b16 %v418, %v417
        %v432 = vpack.c.b16 %v420, %v419
        %v433 = vpack.c.b16 %v422, %v421
        %v434 = vpack.c.b16 %v424, %v423
        %v435 = vpack.c.b16 %v426, %v425
        %v436 = vpack.c.b16 %v428, %v427
        %v461 = vunpack.c.l.b16 %v381
        %v462 = vunpack.c.l.b16 %v382
        %v463 = vunpack.c.l.b16 %v383
        %v464 = vunpack.c.l.b16 %v384
        %v465 = vunpack.c.l.b16 %v385
        %v466 = vunpack.c.l.b16 %v386
        %v467 = vunpack.c.l.b16 %v387
        %v468 = vunpack.c.l.b16 %v388
        %v469 = vunpack.c.l.b16 %v389
        %v470 = vunpack.c.l.b16 %v390
        %v471 = vunpack.c.l.b16 %v391
        %v472 = vunpack.c.l.b16 %v392
        %v473 = vunpack.c.l.b16 %v393
        %v474 = vunpack.c.l.b16 %v394
        %v475 = vunpack.c.l.b16 %v395
        %v476 = vunpack.c.l.b16 %v396
        %v477 = vpack.c.b16 %v462, %v461
        %v478 = vpack.c.b16 %v464, %v463
        %v479 = vpack.c.b16 %v466, %v465
        %v480 = vpack.c.b16 %v468, %v467
        %v481 = vpack.c.b16 %v470, %v469
        %v482 = vpack.c.b16 %v472, %v471
        %v483 = vpack.c.b16 %v474, %v473
        %v484 = vpack.c.b16 %v476, %v475
        %493 = vmatpush.bf16.msra.mxu0 %v484
        %494 = vmatpush.bf16.msra.mxu0 %v483
        %495 = vmatpush.bf16.msra.mxu0 %v482
        %496 = vmatpush.bf16.msra.mxu0 %v481
        %497 = vmatpush.bf16.msra.mxu0 %v480
        %498 = vmatpush.bf16.msra.mxu0 %v479
        %499 = vmatpush.bf16.msra.mxu0 %v478
        %500 = vmatpush.bf16.msra.mxu0 %v477
        %501 = vmatmul.bf16.gmra.mxu0 %v429
        %v502 = vpop.f32.mrf.mxu0
        %v503 = vadd.f32 0.0, %v502
        %v504 = vpop.f32.mrf.mxu0
        %v505 = vadd.f32 0.0, %v504
        %506 = vmatmul.bf16.gmra.mxu0 %v430
        %v507 = vpop.f32.mrf.mxu0
        %v508 = vadd.f32 0.0, %v507
        %v509 = vpop.f32.mrf.mxu0
        %v510 = vadd.f32 0.0, %v509
        %511 = vmatmul.bf16.gmra.mxu0 %v431
        %v512 = vpop.f32.mrf.mxu0
        %v513 = vadd.f32 0.0, %v512
        %v514 = vpop.f32.mrf.mxu0
        %v515 = vadd.f32 0.0, %v514
        %516 = vmatmul.bf16.gmra.mxu0 %v432
        %v517 = vpop.f32.mrf.mxu0
        %v518 = vadd.f32 0.0, %v517
        %v519 = vpop.f32.mrf.mxu0
        %v520 = vadd.f32 0.0, %v519
        %521 = vmatmul.bf16.gmra.mxu0 %v433
        %v522 = vpop.f32.mrf.mxu0
        %v523 = vadd.f32 0.0, %v522
        %v524 = vpop.f32.mrf.mxu0
        %v525 = vadd.f32 0.0, %v524
        %526 = vmatmul.bf16.gmra.mxu0 %v434
        %v527 = vpop.f32.mrf.mxu0
        %v528 = vadd.f32 0.0, %v527
        %v529 = vpop.f32.mrf.mxu0
        %v530 = vadd.f32 0.0, %v529
        %531 = vmatmul.bf16.gmra.mxu0 %v435
        %v532 = vpop.f32.mrf.mxu0
        %v533 = vadd.f32 0.0, %v532
        %v534 = vpop.f32.mrf.mxu0
        %v535 = vadd.f32 0.0, %v534
        %536 = vmatmul.bf16.gmra.mxu0 %v436
        %v537 = vpop.f32.mrf.mxu0
        %v538 = vadd.f32 0.0, %v537
        %v539 = vpop.f32.mrf.mxu0
        %v540 = vadd.f32 0.0, %v539
        %541 = vdwg.mxu0
        %v542 = vadd.f32 %v349, %v503
        %v543 = vadd.f32 %v350, %v505
        %v544 = vadd.f32 %v351, %v508
        %v545 = vadd.f32 %v352, %v510
        %v546 = vadd.f32 %v353, %v513
        %v547 = vadd.f32 %v354, %v515
        %v548 = vadd.f32 %v355, %v518
        %v549 = vadd.f32 %v356, %v520
        %v550 = vadd.f32 %v357, %v523
        %v551 = vadd.f32 %v358, %v525
        %v552 = vadd.f32 %v359, %v528
        %v553 = vadd.f32 %v360, %v530
        %v554 = vadd.f32 %v361, %v533
        %v555 = vadd.f32 %v362, %v535
        %v556 = vadd.f32 %v363, %v538
        %v557 = vadd.f32 %v364, %v540
        %vm558 = vcmask 130048
        %559 = vst.msk [vmem:[#allocation2] sm:$0xff] %vm558, %v542
        %560 = vst.msk [vmem:[#allocation2 + $0x8] sm:$0xff] %vm558, %v543
        %561 = vst.msk [vmem:[#allocation2 + $0x10] sm:$0xff] %vm558, %v544
        %562 = vst.msk [vmem:[#allocation2 + $0x18] sm:$0xff] %vm558, %v545
        %563 = vst.msk [vmem:[#allocation2 + $0x20] sm:$0xff] %vm558, %v546
        %564 = vst.msk [vmem:[#allocation2 + $0x28] sm:$0xff] %vm558, %v547
        %565 = vst.msk [vmem:[#allocation2 + $0x30] sm:$0xff] %vm558, %v548
        %566 = vst.msk [vmem:[#allocation2 + $0x38] sm:$0xff] %vm558, %v549
        %567 = vst.msk [vmem:[#allocation2 + $0x40] sm:$0xff] %vm558, %v550
        %568 = vst.msk [vmem:[#allocation2 + $0x48] sm:$0xff] %vm558, %v551
        %569 = vst.msk [vmem:[#allocation2 + $0x50] sm:$0xff] %vm558, %v552
        %570 = vst.msk [vmem:[#allocation2 + $0x58] sm:$0xff] %vm558, %v553
        %571 = vst.msk [vmem:[#allocation2 + $0x60] sm:$0xff] %vm558, %v554
        %572 = vst.msk [vmem:[#allocation2 + $0x68] sm:$0xff] %vm558, %v555
        %573 = vst.msk [vmem:[#allocation2 + $0x70] sm:$0xff] %vm558, %v556
        %574 = vst.msk [vmem:[#allocation2 + $0x78] sm:$0xff] %vm558, %v557
        %p575 = scmp.eq.s32.totalorder %s30, 3
        // Predicated region
        $region53: #{tpu_custom_call.1} parent=39 // pred_check
          %p576 = pneg %p575
        $region54: #{tpu_custom_call.1} parent=39 // pred_check_branch
          %578 = sbr.rel (%p576) target = $region56
        $region55: #{tpu_custom_call.1} parent=39 // pred_region
          %v579 = vld [vmem:[#allocation2] sm:$0xff]
          %v580 = vld [vmem:[#allocation2 + $0x8] sm:$0xff]
          %v581 = vld [vmem:[#allocation2 + $0x10] sm:$0xff]
          %v582 = vld [vmem:[#allocation2 + $0x18] sm:$0xff]
          %v583 = vld [vmem:[#allocation2 + $0x20] sm:$0xff]
          %v584 = vld [vmem:[#allocation2 + $0x28] sm:$0xff]
          %v585 = vld [vmem:[#allocation2 + $0x30] sm:$0xff]
          %v586 = vld [vmem:[#allocation2 + $0x38] sm:$0xff]
          %v587 = vld [vmem:[#allocation2 + $0x40] sm:$0xff]
          %v588 = vld [vmem:[#allocation2 + $0x48] sm:$0xff]
          %v589 = vld [vmem:[#allocation2 + $0x50] sm:$0xff]
          %v590 = vld [vmem:[#allocation2 + $0x58] sm:$0xff]
          %v591 = vld [vmem:[#allocation2 + $0x60] sm:$0xff]
          %v592 = vld [vmem:[#allocation2 + $0x68] sm:$0xff]
          %v593 = vld [vmem:[#allocation2 + $0x70] sm:$0xff]
          %v594 = vld [vmem:[#allocation2 + $0x78] sm:$0xff]
          %v595 = vld [vmem:[%s2] sm:$0xff]
          %v596 = vld [vmem:[%s2 + $0x8] sm:$0xff]
          %v597 = vld [vmem:[%s3] sm:$0x1]
          %v599 = vperm.slane %v597, 0
          %v602 = vsel %vm558, %v579, 0
          %v605 = vsel %vm558, %v580, 0
          %v608 = vsel %vm558, %v581, 0
          %v611 = vsel %vm558, %v582, 0
          %v614 = vsel %vm558, %v583, 0
          %v617 = vsel %vm558, %v584, 0
          %v620 = vsel %vm558, %v585, 0
          %v623 = vsel %vm558, %v586, 0
          %v626 = vsel %vm558, %v587, 0
          %v629 = vsel %vm558, %v588, 0
          %v632 = vsel %vm558, %v589, 0
          %v635 = vsel %vm558, %v590, 0
          %v638 = vsel %vm558, %v591, 0
          %v641 = vsel %vm558, %v592, 0
          %v644 = vsel %vm558, %v593, 0
          %v647 = vsel %vm558, %v594, 0
          %649 = vmatpush.msra.mxu0 0.0
          %650 = vmatpush.msra.mxu0 0.0
          %651 = vmatpush.msra.mxu0 0.0
          %652 = vmatpush.msra.mxu0 0.0
          %653 = vmatpush.msra.mxu0 0.0
          %654 = vmatpush.msra.mxu0 0.0
          %655 = vmatpush.msra.mxu0 0.0
          %656 = vmatpush.msra.mxu0 0.0
          %657 = vmatpush.msra.mxu0 0.0
          %658 = vmatpush.msra.mxu0 0.0
          %659 = vmatpush.msra.mxu0 0.0
          %660 = vmatpush.msra.mxu0 0.0
          %661 = vmatpush.msra.mxu0 0.0
          %662 = vmatpush.msra.mxu0 0.0
          %663 = vmatpush.msra.mxu0 %v596
          %664 = vmatpush.msra.mxu0 %v595
          %665 = vmatmul.f32.gmra.mxu0 %v602
          %v666 = vpop.f32.mrf.mxu0
          %v667 = vadd.f32 %v599, %v666
          %668 = vmatmul.f32.gmra.mxu0 %v605
          %v669 = vpop.f32.mrf.mxu0
          %v670 = vadd.f32 %v599, %v669
          %671 = vmatmul.f32.gmra.mxu0 %v608
          %v672 = vpop.f32.mrf.mxu0
          %v673 = vadd.f32 %v599, %v672
          %674 = vmatmul.f32.gmra.mxu0 %v611
          %v675 = vpop.f32.mrf.mxu0
          %v676 = vadd.f32 %v599, %v675
          %677 = vmatmul.f32.gmra.mxu0 %v614
          %v678 = vpop.f32.mrf.mxu0
          %v679 = vadd.f32 %v599, %v678
          %680 = vmatmul.f32.gmra.mxu0 %v617
          %v681 = vpop.f32.mrf.mxu0
          %v682 = vadd.f32 %v599, %v681
          %683 = vmatmul.f32.gmra.mxu0 %v620
          %v684 = vpop.f32.mrf.mxu0
          %v685 = vadd.f32 %v599, %v684
          %686 = vmatmul.f32.gmra.mxu0 %v623
          %v687 = vpop.f32.mrf.mxu0
          %v688 = vadd.f32 %v599, %v687
          %689 = vmatmul.f32.gmra.mxu0 %v626
          %v690 = vpop.f32.mrf.mxu0
          %v691 = vadd.f32 %v599, %v690
          %692 = vmatmul.f32.gmra.mxu0 %v629
          %v693 = vpop.f32.mrf.mxu0
          %v694 = vadd.f32 %v599, %v693
          %695 = vmatmul.f32.gmra.mxu0 %v632
          %v696 = vpop.f32.mrf.mxu0
          %v697 = vadd.f32 %v599, %v696
          %698 = vmatmul.f32.gmra.mxu0 %v635
          %v699 = vpop.f32.mrf.mxu0
          %v700 = vadd.f32 %v599, %v699
          %701 = vmatmul.f32.gmra.mxu0 %v638
          %v702 = vpop.f32.mrf.mxu0
          %v703 = vadd.f32 %v599, %v702
          %704 = vmatmul.f32.gmra.mxu0 %v641
          %v705 = vpop.f32.mrf.mxu0
          %v706 = vadd.f32 %v599, %v705
          %707 = vmatmul.f32.gmra.mxu0 %v644
          %v708 = vpop.f32.mrf.mxu0
          %v709 = vadd.f32 %v599, %v708
          %710 = vmatmul.f32.gmra.mxu0 %v647
          %v711 = vpop.f32.mrf.mxu0
          %v712 = vadd.f32 %v599, %v711
          %713 = vdwg.mxu0
          %v714 = vmax.f32 %v667, 0.0
          %v715 = vmax.f32 %v670, 0.0
          %v716 = vmax.f32 %v673, 0.0
          %v717 = vmax.f32 %v676, 0.0
          %v718 = vmax.f32 %v679, 0.0
          %v719 = vmax.f32 %v682, 0.0
          %v720 = vmax.f32 %v685, 0.0
          %v721 = vmax.f32 %v688, 0.0
          %v722 = vmax.f32 %v691, 0.0
          %v723 = vmax.f32 %v694, 0.0
          %v724 = vmax.f32 %v697, 0.0
          %v725 = vmax.f32 %v700, 0.0
          %v726 = vmax.f32 %v703, 0.0
          %v727 = vmax.f32 %v706, 0.0
          %v728 = vmax.f32 %v709, 0.0
          %v729 = vmax.f32 %v712, 0.0
          %730 = vst [vmem:[%s318] sm:$0xff] %v714
          %731 = vst [vmem:[%s318 + $0x8] sm:$0xff] %v715
          %732 = vst [vmem:[%s318 + $0x10] sm:$0xff] %v716
          %733 = vst [vmem:[%s318 + $0x18] sm:$0xff] %v717
          %734 = vst [vmem:[%s318 + $0x20] sm:$0xff] %v718
          %735 = vst [vmem:[%s318 + $0x28] sm:$0xff] %v719
          %736 = vst [vmem:[%s318 + $0x30] sm:$0xff] %v720
          %737 = vst [vmem:[%s318 + $0x38] sm:$0xff] %v721
          %738 = vst [vmem:[%s318 + $0x40] sm:$0xff] %v722
          %739 = vst [vmem:[%s318 + $0x48] sm:$0xff] %v723
          %740 = vst [vmem:[%s318 + $0x50] sm:$0xff] %v724
          %741 = vst [vmem:[%s318 + $0x58] sm:$0xff] %v725
          %742 = vst [vmem:[%s318 + $0x60] sm:$0xff] %v726
          %743 = vst [vmem:[%s318 + $0x68] sm:$0xff] %v727
          %744 = vst [vmem:[%s318 + $0x70] sm:$0xff] %v728
          %745 = vst [vmem:[%s318 + $0x78] sm:$0xff] %v729
        $region56: #{tpu_custom_call.1} parent=39 // pred_fallthru
          _
        %s746 = sand.u32 %s167, 1
        %s747 = scalar_lea.sflag [#allocation5], %s746
        %s748 = sand.u32 %s167, 1
        %s749 = smul.addr %s748, 128
        %s750 = scalar_lea.vmem [#allocation8], %s749
        // Predicated region
        $region57: #{tpu_custom_call.1} parent=39 // pred_check
          %p751 = pneg %p177
        $region58: #{tpu_custom_call.1} parent=39 // pred_check_branch
          %753 = sbr.rel (%p751) target = $region60
        $region59: #{tpu_custom_call.1} parent=39 // pred_region
          %s754 = smul.u32 16, %s29
          %756 = vsyncadd %s747, 0
          %s757 = smul.addr %s754, 8
          %s758 = scalar_lea.hbm %s5, %s757
          %s759 = sshll.u32 %s750, 4
          %s760 = int_to_ptr.vmem [resolvable:$true] %s759
          %s761 = sshll.u32 %s758, 4
          %s762 = int_to_ptr.hbm [resolvable:$true] %s761
          %767 = dma.vmem_to_hbm [thread:$0]  %s760, 2048, %s762, %s747, 128, 128, 8
        $region60: #{tpu_custom_call.1} parent=39 // pred_fallthru
          _
      $region40: #{tpu_custom_call.1} parent=5 // pred_fallthru
        _
      %p768 = scmp.le.s32.totalorder 2, %s20
      // Predicated region
      $region61: #{tpu_custom_call.1} parent=5 // pred_check
        %p769 = pneg %p768
      $region62: #{tpu_custom_call.1} parent=5 // pred_check_branch
        %771 = sbr.rel (%p769) target = $region64
      $region63: #{tpu_custom_call.1} parent=5 // pred_region
        %s772 = ssub.s32 %s20, 2
        // Predicated region
        $region65: #{tpu_custom_call.1} parent=63 // pred_check
          %p773 = pneg %p183
        $region66: #{tpu_custom_call.1} parent=63 // pred_check_branch
          %775 = sbr.rel (%p773) target = $region68
        $region67: #{tpu_custom_call.1} parent=63 // pred_region
          %s776 = sand.u32 %s168, 1
          %s777 = scalar_lea.sflag [#allocation5], %s776
          %s778 = sand.u32 %s168, 1
          %s779 = smul.addr %s778, 128
          %s780 = scalar_lea.vmem [#allocation8], %s779
          %782 = dma.done %s777, 2048
        $region68: #{tpu_custom_call.1} parent=63 // pred_fallthru
          _
      $region64: #{tpu_custom_call.1} parent=5 // pred_fallthru
        _
    $region6: #{tpu_custom_call.1} parent=1 // loop_footer
      %s24 = sadd.s32 1, %s20
    $region7: #{tpu_custom_call.1} parent=1 // loop_footer_branch
      %19 = sbr.rel target = $region3
    $region8: #{tpu_custom_call.1} parent=1 // loop_exit
      _
    %783 = vsyncpa [#allocation4], 1
    %s784 = scalar_lea.sflag [#allocation4], 1
    %785 = vsyncpa %s784, 1
    %786 = vsyncpa [#allocation7], 1
    %s787 = scalar_lea.sflag [#allocation7], 1
    %788 = vsyncpa %s787, 1
    %789 = vsyncpa [#allocation5], 1
    %s790 = scalar_lea.sflag [#allocation5], 1
    %791 = vsyncpa %s790, 1

</llo_original>
